<compile_context>
chip_gen: v5e
topology: v5e:2x2
jax: 0.10.0
libtpu: 0.0.40
codegen_flags: <defaults>
</compile_context>

<pallas_src>
import math
from functools import partial

import jax
import jax.numpy as jnp
from jax.experimental import pallas as pl
from jax.experimental.pallas import tpu as pltpu


def _round_up(x: int, m: int) -> int:
    return ((x + m - 1) // m) * m


def _phoneme_embedding_kernel(tok_ref, emb_ref, o_ref, *, scale, vocab_pad):
    # tok_ref: (TN, 1) int32   -- token ids for this tile (sublane axis)
    # emb_ref: (V_pad, E)      -- full embedding table, resident in VMEM
    # o_ref:   (TN, E)         -- output tile (lane-dense, sublane-full)
    tok = tok_ref[...]                                                 # (TN, 1)
    emb = emb_ref[...]                                                 # (V_pad, E)
    iota = jax.lax.broadcasted_iota(jnp.int32, (tok.shape[0], vocab_pad), 1)
    one_hot = (tok == iota).astype(emb.dtype)                          # (TN, V_pad)
    gathered = jnp.dot(one_hot, emb, preferred_element_type=jnp.float32)
    o_ref[...] = (gathered * scale).astype(o_ref.dtype)


def phoneme_embedding_forward(tokens: jnp.ndarray,
                              emb_table: jnp.ndarray,
                              *, tile_tokens: int = 256) -> jnp.ndarray:
    """tokens: integer array, any shape; emb_table: (vocab_size, emb_size)."""
    orig_shape = tokens.shape
    V, E = emb_table.shape
    scale = math.sqrt(float(E))

    # Glue: flatten tokens, pad to a tile multiple (padding id 0 is a valid row
    # and the padded outputs are sliced off afterwards).
    flat = tokens.reshape(-1).astype(jnp.int32)
    N = flat.shape[0]
    TN = max(8, min(tile_tokens, _round_up(N, 8)))      # sublane-full tiles
    N_pad = _round_up(N, TN)
    V_pad = _round_up(V, 8)                             # tidy table layout

    tok2d = jnp.pad(flat, (0, N_pad - N)).reshape(N_pad, 1)
    table = jnp.pad(emb_table, ((0, V_pad - V), (0, 0)))

    grid = (N_pad // TN,)

    out = pl.pallas_call(
        partial(_phoneme_embedding_kernel, scale=scale, vocab_pad=V_pad),
        out_shape=jax.ShapeDtypeStruct((N_pad, E), emb_table.dtype),
        grid=grid,
        in_specs=[
            pl.BlockSpec((TN, 1), lambda i: (i, 0)),      # token-id tile
            pl.BlockSpec((V_pad, E), lambda i: (0, 0)),   # table: resident block
        ],
        out_specs=pl.BlockSpec((TN, E), lambda i: (i, 0)),
        compiler_params=pltpu.CompilerParams(
            dimension_semantics=("parallel",)),           # megacore-shardable
    )(tok2d, table)

    return out[:N].reshape(*orig_shape, E)


if __name__ == "__main__":
    # Small shapes consistent with the module: batch=2, seq=8, vocab=40, emb=32.
    vocab_size, emb_size = 40, 32
    batch, seq = 2, 8

    key = jax.random.PRNGKey(0)
    k_tok, k_emb = jax.random.split(key)
    tokens = jax.random.randint(k_tok, (batch, seq), 0, vocab_size, dtype=jnp.int32)
    emb_table = jax.random.normal(k_emb, (vocab_size, emb_size), dtype=jnp.float32)

    out = phoneme_embedding_forward(tokens, emb_table)
    out = jax.block_until_ready(out)

    # Reference check against plain JAX (same math as the PyTorch forward).
    ref = emb_table[tokens] * math.sqrt(emb_size)
    assert out.shape == (batch, seq, emb_size)
    assert jnp.allclose(out, ref, atol=1e-5, rtol=1e-5), "mismatch vs reference"

    print("KERNEL_OK")
</pallas_src>

<mosaic_0001>
module attributes {stable_mosaic.version = 11 : i64} {
  func.func @_phoneme_embedding_kernel(%arg0: i32, %arg1: memref<16x1xi32, #tpu.memory_space<vmem>>, %arg2: memref<40x32xf32, #tpu.memory_space<vmem>>, %arg3: memref<16x32xf32, #tpu.memory_space<vmem>>) attributes {dimension_semantics = [#tpu.dimension_semantics<parallel>], iteration_bounds = array<i64: 1>, scalar_prefetch = 0 : i64, scratch_operands = 0 : i64, tpu.core_type = #tpu.core_type<tc>, window_params = [{transform_indices = @transform_0, window_bounds = array<i64: 16, 1>}, {pipeline_mode = #tpu.pipeline_mode<synchronous>, transform_indices = @transform_1, window_bounds = array<i64: 40, 32>}, {transform_indices = @transform_2, window_bounds = array<i64: 16, 32>}]} {
    %c0 = arith.constant 0 : index
    %c0_0 = arith.constant 0 : index
    %0 = vector.load %arg1[%c0, %c0_0] : memref<16x1xi32, #tpu.memory_space<vmem>>, vector<16x1xi32>
    %c0_1 = arith.constant 0 : index
    %c0_2 = arith.constant 0 : index
    %1 = vector.load %arg2[%c0_1, %c0_2] : memref<40x32xf32, #tpu.memory_space<vmem>>, vector<40x32xf32>
    %2 = tpu.iota {dimensions = array<i32: 1>} : vector<16x40xi32>
    %3 = vector.broadcast %0 : vector<16x1xi32> to vector<16x40xi32>
    %4 = arith.cmpi eq, %3, %2 : vector<16x40xi32>
    %5 = arith.extui %4 : vector<16x40xi1> to vector<16x40xi32>
    %6 = arith.sitofp %5 : vector<16x40xi32> to vector<16x40xf32>
    %cst = arith.constant dense<0.000000e+00> : vector<16x32xf32>
    %7 = tpu.matmul %6, %1, %cst {dimension_numbers = #tpu.dot_dimension_numbers<[1], [0], [0], [1], [0, 0, 1, 1], [], []>} : vector<16x40xf32>, vector<40x32xf32>, vector<16x32xf32> -> vector<16x32xf32>
    %cst_3 = arith.constant 5.65685415 : f32
    %8 = vector.broadcast %cst_3 : f32 to vector<16x32xf32>
    %9 = arith.mulf %7, %8 : vector<16x32xf32>
    %c0_4 = arith.constant 0 : index
    %c0_5 = arith.constant 0 : index
    %10 = vector.load %arg3[%c0_4, %c0_5] : memref<16x32xf32, #tpu.memory_space<vmem>>, vector<16x32xf32>
    tpu.vector_store %arg3[%c0_4, %c0_5], %9 {strides = array<i32>} : memref<16x32xf32, #tpu.memory_space<vmem>>, vector<16x32xf32>,
    return
  }
  func.func @transform_0(%arg0: i32) -> (i32, i32) {
    %c0_i32 = arith.constant 0 : i32
    %c0_i32_0 = arith.constant 0 : i32
    return %arg0, %c0_i32 : i32, i32
  }
  func.func @transform_1(%arg0: i32) -> (i32, i32) {
    %c0_i32 = arith.constant 0 : i32
    %c0_i32_0 = arith.constant 0 : i32
    %c0_i32_1 = arith.constant 0 : i32
    return %c0_i32, %c0_i32_0 : i32, i32
  }
  func.func @transform_2(%arg0: i32) -> (i32, i32) {
    %c0_i32 = arith.constant 0 : i32
    %c0_i32_0 = arith.constant 0 : i32
    return %arg0, %c0_i32 : i32, i32
  }
}

</mosaic_0001>

<llo_original>
// kernel: tpu_custom_call.1
$region0: #{tpu_custom_call.1}
  #allocation0 [shape = 'u32[]', space=smem, size = 0x4, offset = 0x4, fixed_abs, tag = 'smem constant byte address 0x4 - core index']
  #allocation1 [shape = 'u32[72,128]{1,0:T(1,128)}', space=vmem, size = 0x9000, scoped, tag = 'internal scratch']
  %s0 = inlined_call_operand.vmem [shape: s32[16,1], index: 0, kind: input, shape index: {}]
  %s1 = inlined_call_operand.vmem [shape: f32[40,32], index: 1, kind: input, shape index: {}]
  %s2 = inlined_call_operand.hbm [shape: f32[16,32], index: 2, kind: output, shape index: {}]
  %s3 = sld [smem:[#allocation0]]
  $region18: #{tpu_custom_call.1} parent=0
    _
  %s5 = ssub.s32 1, %s3
  %s6 = scalar_select 0, %s5, %s3
  $region1: #{tpu_custom_call.1} parent=0
    #allocation2 [shape = 'u8[8192]{0}', space=vmem, size = 0x2000, scoped, tag = 'output window, operand 0, single buffered']
    #allocation3 [shape = 's32[1]{0}', space=sflag, size = 0x4, scoped, tag = 'scoped memory for tpu_custom_call.1']
    %7 = vsyncpa [#allocation3], 0
    // Predicated region
    $region2: #{tpu_custom_call.1} parent=1 // pred_check
      _
    $region3: #{tpu_custom_call.1} parent=1 // pred_check_branch
      %9 = sbr.rel (0) target = $region5
    $region4: #{tpu_custom_call.1} parent=1 // pred_region
      _
    $region5: #{tpu_custom_call.1} parent=1 // pred_fallthru
      _
    // Predicated region
    $region6: #{tpu_custom_call.1} parent=1 // pred_check
      _
    $region7: #{tpu_custom_call.1} parent=1 // pred_check_branch
      %11 = sbr.rel (0) target = $region9
    $region8: #{tpu_custom_call.1} parent=1 // pred_region
      _
    $region9: #{tpu_custom_call.1} parent=1 // pred_fallthru
      _
    %v12 = vld [vmem:[%s0] sm:$0xff]
    %v13 = vld [vmem:[%s0 + $0x8] sm:$0xff]
    %v14 = vld [vmem:[%s1] sm:$0xff]
    %v15 = vld [vmem:[%s1 + $0x8] sm:$0xff]
    %v16 = vld [vmem:[%s1 + $0x10] sm:$0xff]
    %v17 = vld [vmem:[%s1 + $0x18] sm:$0xff]
    %v18 = vld [vmem:[%s1 + $0x20] sm:$0xff]
    %v19 = vlaneseq
    %v20 = vand.u32 %v19, 127
    %21 = vset.pattern.permute.xlu0 0
    %22 = vperm.xlu0 %21, %v12
    %v23 = vpop.permute.xlu0 %22
    %24 = vset.pattern.permute.xlu0 0
    %25 = vperm.xlu0 %24, %v13
    %v26 = vpop.permute.xlu0 %25
    %vm27 = vcmp.eq.s32.totalorder %v23, %v20
    %vm28 = vcmp.eq.s32.totalorder %v26, %v20
    %v29 = vsel %vm27, 1, 0
    %v30 = vsel %vm28, 1, 0
    %v31 = vcvt.s32.f32 %v29
    %v32 = vcvt.s32.f32 %v30
    %vm33 = vcmask 326656
    %v35 = vsel %vm33, %v31, 0
    %v38 = vsel %vm33, %v32, 0
    %40 = vmatpush.msra.mxu0 0.0
    %41 = vmatpush.msra.mxu0 0.0
    %42 = vmatpush.msra.mxu0 0.0
    %43 = vmatpush.msra.mxu0 0.0
    %44 = vmatpush.msra.mxu0 0.0
    %45 = vmatpush.msra.mxu0 0.0
    %46 = vmatpush.msra.mxu0 0.0
    %47 = vmatpush.msra.mxu0 0.0
    %48 = vmatpush.msra.mxu0 0.0
    %49 = vmatpush.msra.mxu0 0.0
    %50 = vmatpush.msra.mxu0 0.0
    %51 = vmatpush.msra.mxu0 %v18
    %52 = vmatpush.msra.mxu0 %v17
    %53 = vmatpush.msra.mxu0 %v16
    %54 = vmatpush.msra.mxu0 %v15
    %55 = vmatpush.msra.mxu0 %v14
    %56 = vmatmul.f32.gmra.mxu0 %v35
    %v57 = vpop.f32.mrf.mxu0
    %v58 = vadd.f32 0.0, %v57
    %59 = vmatmul.f32.gmra.mxu0 %v38
    %v60 = vpop.f32.mrf.mxu0
    %v61 = vadd.f32 0.0, %v60
    %62 = vdwg.mxu0
    %v63 = vmul.f32 %v58, 5.656854
    %v64 = vmul.f32 %v61, 5.656854
    %vm65 = vcmask 261120
    %66 = vst.msk [vmem:[#allocation2] sm:$0xff] %vm65, %v63
    %67 = vst.msk [vmem:[#allocation2 + $0x8] sm:$0xff] %vm65, %v64
    // Predicated region
    $region10: #{tpu_custom_call.1} parent=1 // pred_check
      _
    $region11: #{tpu_custom_call.1} parent=1 // pred_check_branch
      %69 = sbr.rel (0) target = $region13
    $region12: #{tpu_custom_call.1} parent=1 // pred_region
      %71 = vsyncadd [#allocation3], 0
      %s72 = sshll.u32 [#allocation2], 4
      %s73 = int_to_ptr.vmem [resolvable:$true] %s72
      %s74 = sshll.u32 %s2, 4
      %s75 = int_to_ptr.hbm [resolvable:$true] %s74
      %80 = dma.vmem_to_hbm [thread:$0]  %s73, 256, %s75, [#allocation3], 128, 128, 8
    $region13: #{tpu_custom_call.1} parent=1 // pred_fallthru
      _
    // Predicated region
    $region14: #{tpu_custom_call.1} parent=1 // pred_check
      _
    $region15: #{tpu_custom_call.1} parent=1 // pred_check_branch
      %82 = sbr.rel (0) target = $region17
    $region16: #{tpu_custom_call.1} parent=1 // pred_region
      %84 = dma.done [#allocation3], 256
    $region17: #{tpu_custom_call.1} parent=1 // pred_fallthru
      _
    %85 = vsyncpa [#allocation3], 1

</llo_original>
